<compile_context>
chip_gen: v7x
topology: tpu7x:2x2x1
jax: 0.10.0
libtpu: 0.0.40
codegen_flags: <defaults>
</compile_context>

<pallas_src>
import functools

import jax
import jax.numpy as jnp
from jax.experimental import pallas as pl
from jax.experimental.pallas import tpu as pltpu


def _lsr_nll_kernel(logits_ref, targets_ref, nll_ref,
                    m_scr, l_scr, t_scr, *, k_total, tile_k):
    k_idx = pl.program_id(1)
    k_num = pl.num_programs(1)

    @pl.when(k_idx == 0)
    def _():
        m_scr[...] = jnp.full_like(m_scr, -jnp.inf)
        l_scr[...] = jnp.zeros_like(l_scr)
        t_scr[...] = jnp.zeros_like(t_scr)

    x = logits_ref[...].astype(jnp.float32)                      # (tn, tk)
    tn, tk = x.shape

    # Global class index of each lane in this K tile; mask lanes >= K so block
    # padding never corrupts the log-sum-exp.
    col = jax.lax.broadcasted_iota(jnp.int32, (tn, tk), 1) + k_idx * tile_k
    valid = col < k_total
    x_m = jnp.where(valid, x, -jnp.inf)

    # Online log-sum-exp update (single exp pass per tile).
    m_old = m_scr[...]
    m_new = jnp.maximum(m_old, jnp.max(x_m, axis=-1, keepdims=True))
    alpha = jnp.exp(m_old - m_new)
    l_scr[...] = alpha * l_scr[...] + jnp.sum(jnp.exp(x_m - m_new),
                                              axis=-1, keepdims=True)
    m_scr[...] = m_new

    # Target-logit contribution via one-hot select (targets < K, so padded
    # lanes can never match).
    one_hot = col == targets_ref[...]                            # (tn, tk)
    t_scr[...] = t_scr[...] + jnp.sum(jnp.where(one_hot, x, 0.0),
                                      axis=-1, keepdims=True)

    @pl.when(k_idx == k_num - 1)
    def _():
        # nll = logsumexp(logits) - logit[target]
        nll_ref[...] = m_scr[...] + jnp.log(l_scr[...]) - t_scr[...]


def label_smooth_regularization(outputs, targets, *, K, epsilon=0.1,
                                tile_n=512, tile_k=2048):
    """outputs: (N, K) float logits; targets: (N,) int class indices."""
    assert 0 <= epsilon < 1
    n, k = outputs.shape
    assert k == K

    def _round_up(a, b):
        return (a + b - 1) // b * b

    tn = min(tile_n, _round_up(n, 8))      # sublane multiple of 8
    tk = min(tile_k, _round_up(k, 128))    # lane multiple of 128
    n_pad = _round_up(n, tn)

    logits = outputs
    tgt = targets.astype(jnp.int32).reshape(n, 1)
    if n_pad != n:
        logits = jnp.pad(logits, ((0, n_pad - n), (0, 0)))
        tgt = jnp.pad(tgt, ((0, n_pad - n), (0, 0)))

    grid = (n_pad // tn, pl.cdiv(k, tk))

    kernel = functools.partial(_lsr_nll_kernel, k_total=k, tile_k=tk)
    nll = pl.pallas_call(
        kernel,
        out_shape=jax.ShapeDtypeStruct((n_pad, 1), jnp.float32),
        grid=grid,
        in_specs=[
            pl.BlockSpec((tn, tk), lambda i, kk: (i, kk)),   # logits tile
            pl.BlockSpec((tn, 1), lambda i, kk: (i, 0)),     # targets column
        ],
        out_specs=pl.BlockSpec((tn, 1), lambda i, kk: (i, 0)),
        scratch_shapes=[pltpu.VMEM((tn, 1), jnp.float32)] * 3,  # m, l, t
        compiler_params=pltpu.CompilerParams(
            dimension_semantics=("parallel", "arbitrary")),
    )(logits, tgt)

    ce = jnp.sum(nll[:n, 0]) / jnp.float32(n)   # mean over real rows only
    return ce * jnp.float32(1.0 - epsilon) + jnp.float32(epsilon * (1.0 / K))


def _reference(outputs, targets, K, epsilon):
    logp = jax.nn.log_softmax(outputs.astype(jnp.float32), axis=-1)
    ce = -jnp.mean(logp[jnp.arange(outputs.shape[0]), targets])
    return ce * (1.0 - epsilon) + epsilon * (1.0 / K)


if __name__ == "__main__":
    key = jax.random.PRNGKey(0)

    # Small primary shape (matches the module's (batch, num_classes) logits).
    N, K = 8, 32
    k_logits, k_tgt, k2_logits, k2_tgt = jax.random.split(key, 4)
    outputs = jax.random.normal(k_logits, (N, K), dtype=jnp.float32)
    targets = jax.random.randint(k_tgt, (N,), 0, K, dtype=jnp.int32)

    loss = label_smooth_regularization(outputs, targets, K=K, epsilon=0.1)
    loss = jax.block_until_ready(loss)
    ref = _reference(outputs, targets, K, 0.1)
    assert jnp.allclose(loss, ref, atol=1e-5, rtol=1e-5), (loss, ref)

    # Second check exercising the tiled path: N not multiple of TILE_N,
    # K not multiple of TILE_K (multi-tile online logsumexp + lane masking).
    N2, K2 = 24, 300
    outputs2 = jax.random.normal(k2_logits, (N2, K2), dtype=jnp.float32)
    targets2 = jax.random.randint(k2_tgt, (N2,), 0, K2, dtype=jnp.int32)
    loss2 = label_smooth_regularization(outputs2, targets2, K=K2, epsilon=0.1,
                                        tile_n=8, tile_k=128)
    loss2 = jax.block_until_ready(loss2)
    ref2 = _reference(outputs2, targets2, K2, 0.1)
    assert jnp.allclose(loss2, ref2, atol=1e-5, rtol=1e-5), (loss2, ref2)

    print("KERNEL_OK")
</pallas_src>

<mosaic_0001>
module attributes {stable_mosaic.version = 11 : i64} {
  func.func @_lsr_nll_kernel(%arg0: i32, %arg1: i32, %arg2: memref<8x128xf32, #tpu.memory_space<vmem>>, %arg3: memref<8x1xi32, #tpu.memory_space<vmem>>, %arg4: memref<8x1xf32, #tpu.memory_space<vmem>>, %arg5: memref<8x1xf32, #tpu.memory_space<vmem>>, %arg6: memref<8x1xf32, #tpu.memory_space<vmem>>, %arg7: memref<8x1xf32, #tpu.memory_space<vmem>>) attributes {dimension_semantics = [#tpu.dimension_semantics<parallel>, #tpu.dimension_semantics<arbitrary>], iteration_bounds = array<i64: 1, 1>, scalar_prefetch = 0 : i64, scratch_operands = 3 : i64, tpu.core_type = #tpu.core_type<tc>, window_params = [{transform_indices = @transform_0, window_bounds = array<i64: 8, 128>}, {transform_indices = @transform_1, window_bounds = array<i64: 8, 1>}, {transform_indices = @transform_2, window_bounds = array<i64: 8, 1>}]} {
    %c0_i32 = arith.constant 0 : i32
    %0 = arith.cmpi eq, %arg1, %c0_i32 : i32
    %1 = arith.extui %0 : i1 to i32
    %c0_i32_0 = arith.constant 0 : i32
    %2 = arith.cmpi ne, %1, %c0_i32_0 : i32
    scf.if %2 {
      %cst_22 = arith.constant 0xFF800000 : f32
      %41 = vector.broadcast %cst_22 : f32 to vector<8x1xf32>
      %c0_23 = arith.constant 0 : index
      %c0_24 = arith.constant 0 : index
      %42 = vector.load %arg5[%c0_23, %c0_24] : memref<8x1xf32, #tpu.memory_space<vmem>>, vector<8x1xf32>
      tpu.vector_store %arg5[%c0_23, %c0_24], %41 {strides = array<i32>} : memref<8x1xf32, #tpu.memory_space<vmem>>, vector<8x1xf32>,
      %cst_25 = arith.constant 0.000000e+00 : f32
      %43 = vector.broadcast %cst_25 : f32 to vector<8x1xf32>
      %c0_26 = arith.constant 0 : index
      %c0_27 = arith.constant 0 : index
      %44 = vector.load %arg6[%c0_26, %c0_27] : memref<8x1xf32, #tpu.memory_space<vmem>>, vector<8x1xf32>
      tpu.vector_store %arg6[%c0_26, %c0_27], %43 {strides = array<i32>} : memref<8x1xf32, #tpu.memory_space<vmem>>, vector<8x1xf32>,
      %cst_28 = arith.constant 0.000000e+00 : f32
      %45 = vector.broadcast %cst_28 : f32 to vector<8x1xf32>
      %c0_29 = arith.constant 0 : index
      %c0_30 = arith.constant 0 : index
      %46 = vector.load %arg7[%c0_29, %c0_30] : memref<8x1xf32, #tpu.memory_space<vmem>>, vector<8x1xf32>
      tpu.vector_store %arg7[%c0_29, %c0_30], %45 {strides = array<i32>} : memref<8x1xf32, #tpu.memory_space<vmem>>, vector<8x1xf32>,
    } else {
    }
    %c0 = arith.constant 0 : index
    %c0_1 = arith.constant 0 : index
    %3 = vector.load %arg2[%c0, %c0_1] : memref<8x128xf32, #tpu.memory_space<vmem>>, vector<8x128xf32>
    %4 = tpu.iota {dimensions = array<i32: 1>} : vector<8x128xi32>
    %c128_i32 = arith.constant 128 : i32
    %5 = arith.muli %arg1, %c128_i32 : i32
    %6 = vector.broadcast %5 : i32 to vector<8x128xi32>
    %7 = arith.addi %4, %6 : vector<8x128xi32>
    %c32_i32 = arith.constant 32 : i32
    %8 = vector.broadcast %c32_i32 : i32 to vector<8x128xi32>
    %9 = arith.cmpi slt, %7, %8 : vector<8x128xi32>
    %cst = arith.constant 0xFF800000 : f32
    %10 = vector.broadcast %cst : f32 to vector<8x128xf32>
    %11 = arith.select %9, %3, %10 : vector<8x128xi1>, vector<8x128xf32>
    %c0_2 = arith.constant 0 : index
    %c0_3 = arith.constant 0 : index
    %12 = vector.load %arg5[%c0_2, %c0_3] : memref<8x1xf32, #tpu.memory_space<vmem>>, vector<8x1xf32>
    %cst_4 = arith.constant dense<0xFF800000> : vector<8xf32>
    %13 = vector.multi_reduction <maximumf>, %11, %cst_4 [1] : vector<8x128xf32> to vector<8xf32>
    %14 = vector.shape_cast %13 : vector<8xf32> to vector<8x1xf32>
    %15 = arith.maximumf %12, %14 : vector<8x1xf32>
    %16 = arith.subf %12, %15 : vector<8x1xf32>
    %17 = math.exp %16 : vector<8x1xf32>
    %c0_5 = arith.constant 0 : index
    %c0_6 = arith.constant 0 : index
    %18 = vector.load %arg6[%c0_5, %c0_6] : memref<8x1xf32, #tpu.memory_space<vmem>>, vector<8x1xf32>
    %19 = arith.mulf %17, %18 : vector<8x1xf32>
    %20 = vector.broadcast %15 : vector<8x1xf32> to vector<8x128xf32>
    %21 = arith.subf %11, %20 : vector<8x128xf32>
    %22 = math.exp %21 : vector<8x128xf32>
    %cst_7 = arith.constant dense<0.000000e+00> : vector<8xf32>
    %23 = vector.multi_reduction <add>, %22, %cst_7 [1] : vector<8x128xf32> to vector<8xf32>
    %24 = vector.shape_cast %23 : vector<8xf32> to vector<8x1xf32>
    %25 = arith.addf %19, %24 : vector<8x1xf32>
    %c0_8 = arith.constant 0 : index
    %c0_9 = arith.constant 0 : index
    %26 = vector.load %arg6[%c0_8, %c0_9] : memref<8x1xf32, #tpu.memory_space<vmem>>, vector<8x1xf32>
    tpu.vector_store %arg6[%c0_8, %c0_9], %25 {strides = array<i32>} : memref<8x1xf32, #tpu.memory_space<vmem>>, vector<8x1xf32>,
    %c0_10 = arith.constant 0 : index
    %c0_11 = arith.constant 0 : index
    %27 = vector.load %arg5[%c0_10, %c0_11] : memref<8x1xf32, #tpu.memory_space<vmem>>, vector<8x1xf32>
    tpu.vector_store %arg5[%c0_10, %c0_11], %15 {strides = array<i32>} : memref<8x1xf32, #tpu.memory_space<vmem>>, vector<8x1xf32>,
    %c0_12 = arith.constant 0 : index
    %c0_13 = arith.constant 0 : index
    %28 = vector.load %arg3[%c0_12, %c0_13] : memref<8x1xi32, #tpu.memory_space<vmem>>, vector<8x1xi32>
    %29 = vector.broadcast %28 : vector<8x1xi32> to vector<8x128xi32>
    %30 = arith.cmpi eq, %7, %29 : vector<8x128xi32>
    %c0_14 = arith.constant 0 : index
    %c0_15 = arith.constant 0 : index
    %31 = vector.load %arg7[%c0_14, %c0_15] : memref<8x1xf32, #tpu.memory_space<vmem>>, vector<8x1xf32>
    %cst_16 = arith.constant 0.000000e+00 : f32
    %32 = vector.broadcast %cst_16 : f32 to vector<8x128xf32>
    %33 = arith.select %30, %3, %32 : vector<8x128xi1>, vector<8x128xf32>
    %cst_17 = arith.constant dense<0.000000e+00> : vector<8xf32>
    %34 = vector.multi_reduction <add>, %33, %cst_17 [1] : vector<8x128xf32> to vector<8xf32>
    %35 = vector.shape_cast %34 : vector<8xf32> to vector<8x1xf32>
    %36 = arith.addf %31, %35 : vector<8x1xf32>
    %c0_18 = arith.constant 0 : index
    %c0_19 = arith.constant 0 : index
    %37 = vector.load %arg7[%c0_18, %c0_19] : memref<8x1xf32, #tpu.memory_space<vmem>>, vector<8x1xf32>
    tpu.vector_store %arg7[%c0_18, %c0_19], %36 {strides = array<i32>} : memref<8x1xf32, #tpu.memory_space<vmem>>, vector<8x1xf32>,
    %c0_i32_20 = arith.constant 0 : i32
    %38 = arith.cmpi eq, %arg1, %c0_i32_20 : i32
    %39 = arith.extui %38 : i1 to i32
    %c0_i32_21 = arith.constant 0 : i32
    %40 = arith.cmpi ne, %39, %c0_i32_21 : i32
    scf.if %40 {
      %c0_22 = arith.constant 0 : index
      %c0_23 = arith.constant 0 : index
      %41 = vector.load %arg5[%c0_22, %c0_23] : memref<8x1xf32, #tpu.memory_space<vmem>>, vector<8x1xf32>
      %c0_24 = arith.constant 0 : index
      %c0_25 = arith.constant 0 : index
      %42 = vector.load %arg6[%c0_24, %c0_25] : memref<8x1xf32, #tpu.memory_space<vmem>>, vector<8x1xf32>
      %43 = math.log %42 : vector<8x1xf32>
      %44 = arith.addf %41, %43 : vector<8x1xf32>
      %c0_26 = arith.constant 0 : index
      %c0_27 = arith.constant 0 : index
      %45 = vector.load %arg7[%c0_26, %c0_27] : memref<8x1xf32, #tpu.memory_space<vmem>>, vector<8x1xf32>
      %46 = arith.subf %44, %45 : vector<8x1xf32>
      %c0_28 = arith.constant 0 : index
      %c0_29 = arith.constant 0 : index
      %47 = vector.load %arg4[%c0_28, %c0_29] : memref<8x1xf32, #tpu.memory_space<vmem>>, vector<8x1xf32>
      tpu.vector_store %arg4[%c0_28, %c0_29], %46 {strides = array<i32>} : memref<8x1xf32, #tpu.memory_space<vmem>>, vector<8x1xf32>,
    } else {
    }
    return
  }
  func.func @transform_0(%arg0: i32, %arg1: i32) -> (i32, i32) {
    %c0_i32 = arith.constant 0 : i32
    return %arg0, %arg1 : i32, i32
  }
  func.func @transform_1(%arg0: i32, %arg1: i32) -> (i32, i32) {
    %c0_i32 = arith.constant 0 : i32
    %c0_i32_0 = arith.constant 0 : i32
    return %arg0, %c0_i32 : i32, i32
  }
  func.func @transform_2(%arg0: i32, %arg1: i32) -> (i32, i32) {
    %c0_i32 = arith.constant 0 : i32
    %c0_i32_0 = arith.constant 0 : i32
    return %arg0, %c0_i32 : i32, i32
  }
}

</mosaic_0001>

<llo_original>
// kernel: tpu_custom_call.1
$region0: #{tpu_custom_call.1}
  #allocation0 [shape = 'u32[]', space=smem, size = 0x4, offset = 0x4, fixed_abs, tag = 'smem constant byte address 0x4 - core index']
  #allocation1 [shape = 'u32[144,128]{1,0:T(1,128)}', space=vmem, size = 0x12000, scoped, tag = 'internal scratch']
  #allocation2 [shape = 'f32[8,1]{1,0:T(8,128)}', space=vmem, size = 0x1000, scoped, tag = 'scratch operand']
  #allocation3 [shape = 'f32[8,1]{1,0:T(8,128)}', space=vmem, size = 0x1000, scoped, tag = 'scratch operand']
  #allocation4 [shape = 'f32[8,1]{1,0:T(8,128)}', space=vmem, size = 0x1000, scoped, tag = 'scratch operand']
  %s0 = inlined_call_operand.vmem [shape: f32[8,32], index: 0, kind: input, shape index: {}]
  %s1 = inlined_call_operand.vmem [shape: s32[8,1], index: 1, kind: input, shape index: {}]
  %s2 = inlined_call_operand.vmem [shape: f32[8,1], index: 2, kind: output, shape index: {}]
  %s3 = sld [smem:[#allocation0]]
  $region26: #{tpu_custom_call.1} parent=0
    _
  %s5 = ssub.s32 1, %s3
  %s6 = scalar_select 0, %s5, %s3
  // Predicated region
  $region2: #{tpu_custom_call.1} parent=0 // pred_check
    _
  $region3: #{tpu_custom_call.1} parent=0 // pred_check_branch
    %8 = sbr.rel (0) target = $region5
  $region4: #{tpu_custom_call.1} parent=0 // pred_region
    _
  $region5: #{tpu_custom_call.1} parent=0 // pred_fallthru
    _
  // Predicated region
  $region6: #{tpu_custom_call.1} parent=0 // pred_check
    _
  $region7: #{tpu_custom_call.1} parent=0 // pred_check_branch
    %10 = sbr.rel (0) target = $region9
  $region8: #{tpu_custom_call.1} parent=0 // pred_region
    _
  $region9: #{tpu_custom_call.1} parent=0 // pred_fallthru
    _
  %p11 = scmp.eq.s32.totalorder 0, 0
  // Predicated region
  $region10: #{tpu_custom_call.1} parent=0 // pred_check
    %p12 = pneg %p11
  $region11: #{tpu_custom_call.1} parent=0 // pred_check_branch
    %14 = sbr.rel (%p12) target = $region13
  $region12: #{tpu_custom_call.1} parent=0 // pred_region
    %vm15 = vcmask 7168
    %16 = vst.msk [vmem:[#allocation2] sm:$0xff] %vm15, -inf
    %17 = vst.msk [vmem:[#allocation3] sm:$0xff] %vm15, 0.0
    %18 = vst.msk [vmem:[#allocation4] sm:$0xff] %vm15, 0.0
  $region13: #{tpu_custom_call.1} parent=0 // pred_fallthru
    _
  %v19 = vld [vmem:[%s0] sm:$0xff]
  %v20 = vlaneseq
  %v21 = vand.u32 %v20, 127
  %s22 = smul.u32 0, 128
  %v23 = vstv %s22
  %v24 = vadd.s32 %v21, %v23
  %vm25 = vcmp.lt.s32.totalorder %v24, 32
  %v26 = vsel %vm25, %v19, -inf
  %v27 = vld [vmem:[#allocation2] sm:$0xff]
  %28 = vmax.xlane.f32.xlu0 %v26
  %v29 = vpop.xlane.xlu0 %28
  %v30 = vmax.f32 %v27, %v29
  %v31 = vsub.f32 %v27, %v30
  %v32 = vmul.f32 %v31, 1.442695
  %v33 = vpow.pop %v32
  %v34 = vld [vmem:[#allocation3] sm:$0xff]
  %v35 = vmul.f32 %v33, %v34
  %37 = vset.pattern.permute.xlu0 0
  %38 = vperm.xlu0 %37, %v30
  %v39 = vpop.permute.xlu0 %38
  %v41 = vsub.f32 %v26, %v39
  %v42 = vmul.f32 %v41, 1.442695
  %v43 = vpow.pop %v42
  %44 = vadd.xlane.f32.xlu0 %v43
  %v45 = vpop.xlane.xlu0 %44
  %v46 = vadd.f32 %v35, %v45
  %vm47 = vcmask 7168
  %48 = vst.msk [vmem:[#allocation3] sm:$0xff] %vm47, %v46
  %49 = vst.msk [vmem:[#allocation2] sm:$0xff] %vm47, %v30
  %v50 = vld [vmem:[%s1] sm:$0xff]
  %51 = vset.pattern.permute.xlu0 0
  %52 = vperm.xlu0 %51, %v50
  %v53 = vpop.permute.xlu0 %52
  %vm54 = vcmp.eq.s32.totalorder %v24, %v53
  %v55 = vld [vmem:[#allocation4] sm:$0xff]
  %v56 = vsel %vm54, %v19, 0.0
  %57 = vadd.xlane.f32.xlu0 %v56
  %v58 = vpop.xlane.xlu0 %57
  %v59 = vadd.f32 %v55, %v58
  %60 = vst.msk [vmem:[#allocation4] sm:$0xff] %vm47, %v59
  // Predicated region
  $region14: #{tpu_custom_call.1} parent=0 // pred_check
    %p61 = pneg %p11
  $region15: #{tpu_custom_call.1} parent=0 // pred_check_branch
    %63 = sbr.rel (%p61) target = $region17
  $region16: #{tpu_custom_call.1} parent=0 // pred_region
    %v64 = vld [vmem:[#allocation2] sm:$0xff]
    %v65 = vld [vmem:[#allocation3] sm:$0xff]
    %v66 = vlog2.pop %v65
    %v67 = vmul.f32 %v66, 0.6931472
    %v68 = vadd.f32 %v64, %v67
    %v69 = vld [vmem:[#allocation4] sm:$0xff]
    %v70 = vsub.f32 %v68, %v69
    %71 = vst.msk [vmem:[%s2] sm:$0xff] %vm47, %v70
  $region17: #{tpu_custom_call.1} parent=0 // pred_fallthru
    _
  // Predicated region
  $region18: #{tpu_custom_call.1} parent=0 // pred_check
    _
  $region19: #{tpu_custom_call.1} parent=0 // pred_check_branch
    %73 = sbr.rel (0) target = $region21
  $region20: #{tpu_custom_call.1} parent=0 // pred_region
    _
  $region21: #{tpu_custom_call.1} parent=0 // pred_fallthru
    _
  // Predicated region
  $region22: #{tpu_custom_call.1} parent=0 // pred_check
    _
  $region23: #{tpu_custom_call.1} parent=0 // pred_check_branch
    %75 = sbr.rel (0) target = $region25
  $region24: #{tpu_custom_call.1} parent=0 // pred_region
    _
  $region25: #{tpu_custom_call.1} parent=0 // pred_fallthru
    _

</llo_original>
